<compile_context>
chip_gen: v6e
topology: v6e:2x2x1
jax: 0.10.0
libtpu: 0.0.40
codegen_flags: <defaults>
</compile_context>

<pallas_src>
import functools

import jax
import jax.numpy as jnp
from jax.experimental import pallas as pl
from jax.experimental.pallas import tpu as pltpu


def _rope_quant_kernel(q_ref, k_ref, cos_ref, sin_ref, qo_ref, ko_ref,
                       *, tile_s, num_heads, num_kv_heads, head_dim):
    """One (batch, seq-tile) per grid step.

    q_ref : (tile_s * num_heads,    D)   rows ordered (token, head)
    k_ref : (tile_s * num_kv_heads, D)
    cos/sin : (tile_s, D)
    """
    D = head_dim
    half = D // 2

    cos = cos_ref[...].astype(jnp.float32)          # (tile_s, D)
    sin = sin_ref[...].astype(jnp.float32)          # (tile_s, D)

    def rope(x, n_heads):
        rows = tile_s * n_heads
        # Broadcast cos/sin over the head axis: rows are (token, head) with the
        # head index fastest, so repeat each token row n_heads times (sublane
        # repeat; done once per tile, shared by both FMAs below).
        cos_b = jnp.broadcast_to(cos[:, None, :], (tile_s, n_heads, D)).reshape(rows, D)
        sin_b = jnp.broadcast_to(sin[:, None, :], (tile_s, n_heads, D)).reshape(rows, D)
        # rotate_half(x) = [-x2, x1]: negate the second half, then rotate by D/2
        # on the lane axis via the XLU (free slot in this VPU-bound kernel).
        lane = jax.lax.broadcasted_iota(jnp.int32, (rows, D), 1)
        sign = jnp.where(lane < half, jnp.float32(1.0), jnp.float32(-1.0))
        rot = pltpu.roll(x * sign, shift=half, axis=1)
        return x * cos_b + rot * sin_b

    q = q_ref[...].astype(jnp.float32)              # (tile_s*H,   D)
    k = k_ref[...].astype(jnp.float32)              # (tile_s*Hkv, D)

    q_rot = rope(q, num_heads)
    k_rot = rope(k, num_kv_heads)

    # act_quant_fn: symmetric per-(token, head) int8 fake-quant of rotated q.
    # Rows are exactly (token, head), so a lane-axis max is the right reduction.
    absmax = jnp.max(jnp.abs(q_rot), axis=-1, keepdims=True)          # (rows, 1)
    scale = jnp.where(absmax > 0.0, absmax * jnp.float32(1.0 / 127.0),
                      jnp.float32(1.0))
    inv_scale = pl.reciprocal(scale, approx=True)                     # EUP slot
    q_q = jnp.clip(jnp.round(q_rot * inv_scale), -127.0, 127.0) * scale

    qo_ref[...] = q_q.astype(qo_ref.dtype)
    ko_ref[...] = k_rot.astype(ko_ref.dtype)


def _choose_tile_s(S, num_heads, num_kv_heads, head_dim, itemsize,
                   budget_bytes=16 * 1024 * 1024):
    """Largest seq tile whose double-buffered working set fits the budget and
    satisfies the (8, 128) sublane constraints (or equals full S)."""
    per_tok = (2 * num_heads + 2 * num_kv_heads + 2) * head_dim * itemsize
    max_tile = max(1, budget_bytes // (2 * per_tok))     # 2x: double buffering
    if S <= max_tile:
        return S                                          # full-S block is always layout-legal
    best = S
    for cand in range(1, S + 1):
        if S % cand != 0 or cand > max_tile:
            continue
        if (cand % 8 == 0 and (cand * num_heads) % 8 == 0
                and (cand * num_kv_heads) % 8 == 0):
            best = cand
    return best


def fast_llama_qkv_supply(q, k, v, cos, sin, *, num_heads, num_kv_heads,
                          head_dim, tile_s=None):
    """q/k/v: (B, S, H*D) flat; cos/sin: (S, D). Returns (q_quant, k_rot, v)."""
    B, S, _ = q.shape
    assert cos.shape == (S, head_dim) and sin.shape == (S, head_dim)

    if tile_s is None:
        tile_s = _choose_tile_s(S, num_heads, num_kv_heads, head_dim,
                                jnp.dtype(q.dtype).itemsize)
    assert S % tile_s == 0

    # Metadata-only reshapes: fold heads into the row (sublane) axis so the
    # kernel sees lane-dense (rows, head_dim) slabs.
    q2 = q.reshape(B, S * num_heads, head_dim)
    k2 = k.reshape(B, S * num_kv_heads, head_dim)

    rows_q = tile_s * num_heads
    rows_k = tile_s * num_kv_heads

    kernel = functools.partial(_rope_quant_kernel, tile_s=tile_s,
                               num_heads=num_heads, num_kv_heads=num_kv_heads,
                               head_dim=head_dim)

    q_spec = pl.BlockSpec((None, rows_q, head_dim), lambda b, s: (b, s, 0))
    k_spec = pl.BlockSpec((None, rows_k, head_dim), lambda b, s: (b, s, 0))
    cs_spec = pl.BlockSpec((tile_s, head_dim), lambda b, s: (s, 0))

    qo, ko = pl.pallas_call(
        kernel,
        out_shape=(
            jax.ShapeDtypeStruct((B, S * num_heads, head_dim), q.dtype),
            jax.ShapeDtypeStruct((B, S * num_kv_heads, head_dim), k.dtype),
        ),
        grid_spec=pltpu.PrefetchScalarGridSpec(
            num_scalar_prefetch=0,
            grid=(B, S // tile_s),
            in_specs=[q_spec, k_spec, cs_spec, cs_spec],
            out_specs=[q_spec, k_spec],
        ),
        compiler_params=pltpu.CompilerParams(
            dimension_semantics=("parallel", "parallel"),
            vmem_limit_bytes=32 * 1024 * 1024),
    )(q2, k2, cos, sin)

    q_out = qo.reshape(B, S, num_heads, head_dim)
    k_out = ko.reshape(B, S, num_kv_heads, head_dim)
    v_out = v.reshape(B, S, num_kv_heads, head_dim)   # no kernel / no HBM round-trip
    return q_out, k_out, v_out


def _make_rope_tables(S, D, dtype):
    """HF-style cos/sin: cat([freqs, freqs], -1), shape (S, D) (un-broadcast)."""
    inv_freq = 1.0 / (10000.0 ** (jnp.arange(0, D, 2, dtype=jnp.float32) / D))
    pos = jnp.arange(S, dtype=jnp.float32)
    freqs = pos[:, None] * inv_freq[None, :]          # (S, D/2)
    emb = jnp.concatenate([freqs, freqs], axis=-1)    # (S, D)
    return jnp.cos(emb).astype(dtype), jnp.sin(emb).astype(dtype)


def _reference(q, k, v, cos, sin, num_heads, num_kv_heads, head_dim):
    B, S, _ = q.shape
    q4 = q.reshape(B, S, num_heads, head_dim).astype(jnp.float32)
    k4 = k.reshape(B, S, num_kv_heads, head_dim).astype(jnp.float32)
    cosb = cos.astype(jnp.float32)[None, :, None, :]
    sinb = sin.astype(jnp.float32)[None, :, None, :]
    half = head_dim // 2

    def rope(x):
        x1, x2 = x[..., :half], x[..., half:]
        return x * cosb + jnp.concatenate([-x2, x1], axis=-1) * sinb

    q_rot, k_rot = rope(q4), rope(k4)
    absmax = jnp.max(jnp.abs(q_rot), axis=-1, keepdims=True)
    scale = jnp.where(absmax > 0.0, absmax / 127.0, 1.0)
    q_q = jnp.clip(jnp.round(q_rot / scale), -127.0, 127.0) * scale
    return (q_q.astype(q.dtype), k_rot.astype(k.dtype),
            v.reshape(B, S, num_kv_heads, head_dim))


if __name__ == "__main__":
    # Small Llama-like config: hidden=256, 4 attention heads, 2 KV heads, D=64.
    B, S = 2, 8
    num_heads, num_kv_heads, head_dim = 4, 2, 64
    dtype = jnp.bfloat16

    key = jax.random.PRNGKey(0)
    kq, kk, kv = jax.random.split(key, 3)
    q = jax.random.normal(kq, (B, S, num_heads * head_dim), dtype=jnp.float32).astype(dtype)
    k = jax.random.normal(kk, (B, S, num_kv_heads * head_dim), dtype=jnp.float32).astype(dtype)
    v = jax.random.normal(kv, (B, S, num_kv_heads * head_dim), dtype=jnp.float32).astype(dtype)
    cos, sin = _make_rope_tables(S, head_dim, dtype)

    qo, ko, vo = fast_llama_qkv_supply(
        q, k, v, cos, sin,
        num_heads=num_heads, num_kv_heads=num_kv_heads, head_dim=head_dim)
    jax.block_until_ready((qo, ko, vo))

    q_ref, k_ref, v_ref = _reference(q, k, v, cos, sin,
                                     num_heads, num_kv_heads, head_dim)
    assert qo.shape == (B, S, num_heads, head_dim)
    assert ko.shape == (B, S, num_kv_heads, head_dim)
    assert vo.shape == (B, S, num_kv_heads, head_dim)
    assert jnp.allclose(qo.astype(jnp.float32), q_ref.astype(jnp.float32),
                        atol=2e-1, rtol=2e-1)
    assert jnp.allclose(ko.astype(jnp.float32), k_ref.astype(jnp.float32),
                        atol=1e-1, rtol=1e-1)
    assert jnp.array_equal(vo.astype(jnp.float32), v_ref.astype(jnp.float32))

    print("KERNEL_OK")
</pallas_src>

<mosaic_0001>
module attributes {stable_mosaic.version = 11 : i64} {
  func.func @_rope_quant_kernel(%arg0: i32, %arg1: i32, %arg2: memref<1x32x64xbf16, #tpu.memory_space<vmem>>, %arg3: memref<1x16x64xbf16, #tpu.memory_space<vmem>>, %arg4: memref<8x64xbf16, #tpu.memory_space<vmem>>, %arg5: memref<8x64xbf16, #tpu.memory_space<vmem>>, %arg6: memref<1x32x64xbf16, #tpu.memory_space<vmem>>, %arg7: memref<1x16x64xbf16, #tpu.memory_space<vmem>>) attributes {dimension_semantics = [#tpu.dimension_semantics<parallel>, #tpu.dimension_semantics<parallel>], iteration_bounds = array<i64: 2, 1>, scalar_prefetch = 0 : i64, scratch_operands = 0 : i64, tpu.core_type = #tpu.core_type<tc>, window_params = [{transform_indices = @transform_0, window_bounds = array<i64: 1, 32, 64>}, {transform_indices = @transform_1, window_bounds = array<i64: 1, 16, 64>}, {transform_indices = @transform_2, window_bounds = array<i64: 8, 64>}, {transform_indices = @transform_3, window_bounds = array<i64: 8, 64>}, {transform_indices = @transform_4, window_bounds = array<i64: 1, 32, 64>}, {transform_indices = @transform_5, window_bounds = array<i64: 1, 16, 64>}]} {
    %c0 = arith.constant 0 : index
    %c0_0 = arith.constant 0 : index
    %0 = vector.load %arg4[%c0, %c0_0] : memref<8x64xbf16, #tpu.memory_space<vmem>>, vector<8x64xbf16>
    %1 = arith.extf %0 : vector<8x64xbf16> to vector<8x64xf32>
    %c0_1 = arith.constant 0 : index
    %c0_2 = arith.constant 0 : index
    %2 = vector.load %arg5[%c0_1, %c0_2] : memref<8x64xbf16, #tpu.memory_space<vmem>>, vector<8x64xbf16>
    %3 = arith.extf %2 : vector<8x64xbf16> to vector<8x64xf32>
    %c0_3 = arith.constant 0 : index
    %c0_4 = arith.constant 0 : index
    %c0_5 = arith.constant 0 : index
    %4 = vector.load %arg2[%c0_3, %c0_4, %c0_5] : memref<1x32x64xbf16, #tpu.memory_space<vmem>>, vector<1x32x64xbf16>
    %5 = vector.shape_cast %4 : vector<1x32x64xbf16> to vector<32x64xbf16>
    %6 = arith.extf %5 : vector<32x64xbf16> to vector<32x64xf32>
    %c0_6 = arith.constant 0 : index
    %c0_7 = arith.constant 0 : index
    %c0_8 = arith.constant 0 : index
    %7 = vector.load %arg3[%c0_6, %c0_7, %c0_8] : memref<1x16x64xbf16, #tpu.memory_space<vmem>>, vector<1x16x64xbf16>
    %8 = vector.shape_cast %7 : vector<1x16x64xbf16> to vector<16x64xbf16>
    %9 = arith.extf %8 : vector<16x64xbf16> to vector<16x64xf32>
    %10 = vector.shape_cast %1 : vector<8x64xf32> to vector<8x1x64xf32>
    %11 = vector.shape_cast %10 : vector<8x1x64xf32> to vector<8x1x64xf32>
    %12 = vector.broadcast %11 : vector<8x1x64xf32> to vector<8x4x64xf32>
    %13 = vector.shape_cast %12 : vector<8x4x64xf32> to vector<32x64xf32>
    %14 = vector.shape_cast %3 : vector<8x64xf32> to vector<8x1x64xf32>
    %15 = vector.shape_cast %14 : vector<8x1x64xf32> to vector<8x1x64xf32>
    %16 = vector.broadcast %15 : vector<8x1x64xf32> to vector<8x4x64xf32>
    %17 = vector.shape_cast %16 : vector<8x4x64xf32> to vector<32x64xf32>
    %18 = tpu.iota {dimensions = array<i32: 1>} : vector<32x64xi32>
    %c32_i32 = arith.constant 32 : i32
    %19 = vector.broadcast %c32_i32 : i32 to vector<32x64xi32>
    %20 = arith.cmpi slt, %18, %19 : vector<32x64xi32>
    %cst = arith.constant 1.000000e+00 : f32
    %cst_9 = arith.constant -1.000000e+00 : f32
    %21 = vector.broadcast %cst : f32 to vector<32x64xf32>
    %22 = vector.broadcast %cst_9 : f32 to vector<32x64xf32>
    %23 = arith.select %20, %21, %22 : vector<32x64xi1>, vector<32x64xf32>
    %24 = arith.mulf %6, %23 : vector<32x64xf32>
    %c32_i32_10 = arith.constant 32 : i32
    %25 = tpu.dynamic_rotate %24 by %c32_i32_10 dim 1 : vector<32x64xf32>, i32 -> vector<32x64xf32>
    %26 = arith.mulf %6, %13 : vector<32x64xf32>
    %27 = arith.mulf %25, %17 : vector<32x64xf32>
    %28 = arith.addf %26, %27 : vector<32x64xf32>
    %29 = vector.shape_cast %1 : vector<8x64xf32> to vector<8x1x64xf32>
    %30 = vector.shape_cast %29 : vector<8x1x64xf32> to vector<8x1x64xf32>
    %31 = vector.broadcast %30 : vector<8x1x64xf32> to vector<8x2x64xf32>
    %32 = vector.shape_cast %31 : vector<8x2x64xf32> to vector<16x64xf32>
    %33 = vector.shape_cast %3 : vector<8x64xf32> to vector<8x1x64xf32>
    %34 = vector.shape_cast %33 : vector<8x1x64xf32> to vector<8x1x64xf32>
    %35 = vector.broadcast %34 : vector<8x1x64xf32> to vector<8x2x64xf32>
    %36 = vector.shape_cast %35 : vector<8x2x64xf32> to vector<16x64xf32>
    %37 = tpu.iota {dimensions = array<i32: 1>} : vector<16x64xi32>
    %c32_i32_11 = arith.constant 32 : i32
    %38 = vector.broadcast %c32_i32_11 : i32 to vector<16x64xi32>
    %39 = arith.cmpi slt, %37, %38 : vector<16x64xi32>
    %cst_12 = arith.constant 1.000000e+00 : f32
    %cst_13 = arith.constant -1.000000e+00 : f32
    %40 = vector.broadcast %cst_12 : f32 to vector<16x64xf32>
    %41 = vector.broadcast %cst_13 : f32 to vector<16x64xf32>
    %42 = arith.select %39, %40, %41 : vector<16x64xi1>, vector<16x64xf32>
    %43 = arith.mulf %9, %42 : vector<16x64xf32>
    %c32_i32_14 = arith.constant 32 : i32
    %44 = tpu.dynamic_rotate %43 by %c32_i32_14 dim 1 : vector<16x64xf32>, i32 -> vector<16x64xf32>
    %45 = arith.mulf %9, %32 : vector<16x64xf32>
    %46 = arith.mulf %44, %36 : vector<16x64xf32>
    %47 = arith.addf %45, %46 : vector<16x64xf32>
    %48 = math.absf %28 : vector<32x64xf32>
    %cst_15 = arith.constant dense<0xFF800000> : vector<32xf32>
    %49 = vector.multi_reduction <maximumf>, %48, %cst_15 [1] : vector<32x64xf32> to vector<32xf32>
    %50 = vector.shape_cast %49 : vector<32xf32> to vector<32x1xf32>
    %cst_16 = arith.constant 0.000000e+00 : f32
    %51 = vector.broadcast %cst_16 : f32 to vector<32x1xf32>
    %52 = arith.cmpf ogt, %50, %51 : vector<32x1xf32>
    %cst_17 = arith.constant 0.00787401571 : f32
    %53 = vector.broadcast %cst_17 : f32 to vector<32x1xf32>
    %54 = arith.mulf %50, %53 : vector<32x1xf32>
    %cst_18 = arith.constant 1.000000e+00 : f32
    %55 = vector.broadcast %cst_18 : f32 to vector<32x1xf32>
    %56 = arith.select %52, %54, %55 : vector<32x1xi1>, vector<32x1xf32>
    %57 = tpu.reciprocal %56 {approx = true} : vector<32x1xf32> -> vector<32x1xf32>
    %58 = vector.broadcast %57 : vector<32x1xf32> to vector<32x64xf32>
    %59 = arith.mulf %28, %58 : vector<32x64xf32>
    %60 = math.roundeven %59 : vector<32x64xf32>
    %cst_19 = arith.constant -1.270000e+02 : f32
    %cst_20 = arith.constant 1.270000e+02 : f32
    %61 = vector.broadcast %cst_19 : f32 to vector<32x64xf32>
    %62 = arith.maximumf %61, %60 : vector<32x64xf32>
    %63 = vector.broadcast %cst_20 : f32 to vector<32x64xf32>
    %64 = arith.minimumf %63, %62 : vector<32x64xf32>
    %65 = vector.broadcast %56 : vector<32x1xf32> to vector<32x64xf32>
    %66 = arith.mulf %64, %65 : vector<32x64xf32>
    %67 = arith.truncf %66 : vector<32x64xf32> to vector<32x64xbf16>
    %c0_21 = arith.constant 0 : index
    %c0_22 = arith.constant 0 : index
    %c0_23 = arith.constant 0 : index
    %68 = vector.load %arg6[%c0_21, %c0_22, %c0_23] : memref<1x32x64xbf16, #tpu.memory_space<vmem>>, vector<1x32x64xbf16>
    %69 = vector.shape_cast %68 : vector<1x32x64xbf16> to vector<32x64xbf16>
    %70 = vector.shape_cast %67 : vector<32x64xbf16> to vector<1x32x64xbf16>
    tpu.vector_store %arg6[%c0_21, %c0_22, %c0_23], %70 {strides = array<i32>} : memref<1x32x64xbf16, #tpu.memory_space<vmem>>, vector<1x32x64xbf16>,
    %71 = arith.truncf %47 : vector<16x64xf32> to vector<16x64xbf16>
    %c0_24 = arith.constant 0 : index
    %c0_25 = arith.constant 0 : index
    %c0_26 = arith.constant 0 : index
    %72 = vector.load %arg7[%c0_24, %c0_25, %c0_26] : memref<1x16x64xbf16, #tpu.memory_space<vmem>>, vector<1x16x64xbf16>
    %73 = vector.shape_cast %72 : vector<1x16x64xbf16> to vector<16x64xbf16>
    %74 = vector.shape_cast %71 : vector<16x64xbf16> to vector<1x16x64xbf16>
    tpu.vector_store %arg7[%c0_24, %c0_25, %c0_26], %74 {strides = array<i32>} : memref<1x16x64xbf16, #tpu.memory_space<vmem>>, vector<1x16x64xbf16>,
    return
  }
  func.func @transform_0(%arg0: i32, %arg1: i32) -> (i32, i32, i32) {
    %c0_i32 = arith.constant 0 : i32
    %c0_i32_0 = arith.constant 0 : i32
    return %arg0, %arg1, %c0_i32 : i32, i32, i32
  }
  func.func @transform_1(%arg0: i32, %arg1: i32) -> (i32, i32, i32) {
    %c0_i32 = arith.constant 0 : i32
    %c0_i32_0 = arith.constant 0 : i32
    return %arg0, %arg1, %c0_i32 : i32, i32, i32
  }
  func.func @transform_2(%arg0: i32, %arg1: i32) -> (i32, i32) {
    %c0_i32 = arith.constant 0 : i32
    %c0_i32_0 = arith.constant 0 : i32
    return %arg1, %c0_i32 : i32, i32
  }
  func.func @transform_3(%arg0: i32, %arg1: i32) -> (i32, i32) {
    %c0_i32 = arith.constant 0 : i32
    %c0_i32_0 = arith.constant 0 : i32
    return %arg1, %c0_i32 : i32, i32
  }
  func.func @transform_4(%arg0: i32, %arg1: i32) -> (i32, i32, i32) {
    %c0_i32 = arith.constant 0 : i32
    %c0_i32_0 = arith.constant 0 : i32
    return %arg0, %arg1, %c0_i32 : i32, i32, i32
  }
  func.func @transform_5(%arg0: i32, %arg1: i32) -> (i32, i32, i32) {
    %c0_i32 = arith.constant 0 : i32
    %c0_i32_0 = arith.constant 0 : i32
    return %arg0, %arg1, %c0_i32 : i32, i32, i32
  }
}

</mosaic_0001>

<llo_original>
// kernel: tpu_custom_call.1
$region0: #{tpu_custom_call.1}
  #allocation0 [shape = 'u32[]', space=smem, size = 0x4, offset = 0x4, fixed_abs, tag = 'smem constant byte address 0x4 - core index']
  #allocation1 [shape = 'u32[144,128]{1,0:T(1,128)}', space=vmem, size = 0x12000, scoped, tag = 'internal scratch']
  %s0 = inlined_call_operand.hbm [shape: bf16[2,32,64], index: 0, kind: input, shape index: {}]
  %s1 = inlined_call_operand.hbm [shape: bf16[2,16,64], index: 1, kind: input, shape index: {}]
  %s2 = inlined_call_operand.hbm [shape: bf16[8,64], index: 2, kind: input, shape index: {}]
  %s3 = inlined_call_operand.vmem [shape: bf16[8,64], index: 3, kind: input, shape index: {}]
  %s4 = inlined_call_operand.hbm [shape: bf16[2,32,64], index: 4, kind: output, shape index: {0}]
  %s5 = inlined_call_operand.hbm [shape: bf16[2,16,64], index: 5, kind: output, shape index: {1}]
  %6 = xla_tuple %s4, %s5
  %s7 = sld [smem:[#allocation0]]
  $region69: #{tpu_custom_call.1} parent=0
    _
  %s9 = ssub.s32 1, %s7
  %s10 = scalar_select 0, %s9, %s7
  $region1: #{tpu_custom_call.1} parent=0
    #allocation2 [shape = 'u8[16384]{0}', space=vmem, size = 0x4000, scoped, tag = 'input window, operand 0']
    #allocation3 [shape = 's32[2]{0}', space=sflag, size = 0x8, scoped, tag = 'scoped memory for tpu_custom_call.1']
    #allocation4 [shape = 's32[2]{0}', space=sflag, size = 0x8, scoped, tag = 'scoped memory for tpu_custom_call.1']
    #allocation5 [shape = 'u8[8192]{0}', space=vmem, size = 0x2000, scoped, tag = 'input window, operand 1']
    #allocation6 [shape = 's32[2]{0}', space=sflag, size = 0x8, scoped, tag = 'scoped memory for tpu_custom_call.1']
    #allocation7 [shape = 'u8[2048]{0}', space=vmem, size = 0x800, scoped, tag = 'input window, operand 2, single buffered']
    #allocation8 [shape = 'u8[16384]{0}', space=vmem, size = 0x4000, scoped, tag = 'output window, operand 0']
    #allocation9 [shape = 'u8[8192]{0}', space=vmem, size = 0x2000, scoped, tag = 'output window, operand 1']
    #allocation10 [shape = 's32[2]{0}', space=sflag, size = 0x8, scoped, tag = 'scoped memory for tpu_custom_call.1']
    %11 = vsyncpa [#allocation3], 0
    %s12 = scalar_lea.sflag [#allocation3], 1
    %13 = vsyncpa %s12, 0
    %14 = vsyncpa [#allocation6], 0
    %s15 = scalar_lea.sflag [#allocation6], 1
    %16 = vsyncpa %s15, 0
    %17 = vsyncpa [#allocation4], 0
    %s18 = scalar_lea.sflag [#allocation4], 1
    %19 = vsyncpa %s18, 0
    %20 = vsyncpa [#allocation10], 0
    %s21 = scalar_lea.sflag [#allocation10], 1
    %22 = vsyncpa %s21, 0
    loop: start=0, step=1, limit=4
    $region2: #{tpu_custom_call.1} parent=1 // loop_pre_header
      _
    $region3: #{tpu_custom_call.1} parent=1 // loop_header
      %s24 = sphi 0, %s28
      %p25 = scmp.ge.s32.totalorder %s24, 4
      %s31 = sphi 0, %s43
      %s32 = sphi 0, %s39
      %s33 = sphi 0, %s31
      %s34 = sphi 0, %s32
      %s35 = sphi 0, %s33
      %s36 = sphi 0, %s34
      %s48 = sphi 0, %s50
      %s51 = sphi 0, %s48
      %s52 = sphi 0, %s51
      %s68 = sphi 0, %s52
      %s76 = sphi 0, %s78
      %s79 = sphi 0, %s76
      %s80 = sphi 0, %s79
      %s96 = sphi 0, %s80
      %s102 = sphi 0, %s104
      %s105 = sphi 0, %s102
      %s106 = sphi 0, %s105
      %s122 = sphi 0, %s106
      %s128 = sphi 0, %s130
      %s131 = sphi 0, %s128
      %s132 = sphi 0, %s131
      %s148 = sphi 0, %s132
      %s156 = sphi 0, %s158
      %s159 = sphi 0, %s156
      %s160 = sphi 0, %s159
      %s176 = sphi 0, %s160
      %s184 = sphi 0, %s186
      %s187 = sphi 0, %s184
      %s188 = sphi 0, %s187
      %s204 = sphi 0, %s188
    $region4: #{tpu_custom_call.1} parent=1 // loop_header_branch
      %27 = sbr.rel (%p25) target = $region8
    $region5: #{tpu_custom_call.1} parent=1 // loop_body
      %s29 = ssub.s32 %s24, 1
      %s30 = ssub.s32 %s24, 2
      %s37 = sadd.s32 1, %s32
      %p38 = scmp.ge.s32.totalorder %s37, 1
      %s39 = scalar_select %p38, 0, %s37
      %s40 = sadd.s32 1, %s31
      %s41 = scalar_select %p38, %s40, %s31
      %p42 = scmp.ge.s32.totalorder %s41, 2
      %s43 = scalar_select %p42, 0, %s41
      %s44 = ssub.s32 %s31, %s43
      %s45 = ssub.s32 %s32, %s39
      %s46 = sor.u32 %s44, %s45
      %p47 = scmp.eq.s32.totalorder %s46, 0
      %s49 = sadd.s32 %s48, 1
      %s50 = scalar_select %p47, %s48, %s49
      %p53 = pneg %p47
      %p54 = scmp.eq.s32.totalorder %s24, 1
      %p55 = por %p53, %p54
      %p56 = scmp.ne.s32.totalorder %s48, %s51
      %p57 = scmp.eq.s32.totalorder %s24, 0
      %p58 = por %p56, %p57
      %p59 = scmp.ne.s32.totalorder %s48, %s51
      %p60 = scmp.eq.s32.totalorder %s29, 1
      %p61 = por %p59, %p60
      %p62 = scmp.ne.s32.totalorder %s51, %s52
      %p63 = scmp.eq.s32.totalorder %s29, 0
      %p64 = por %p62, %p63
      %p65 = scmp.ne.s32.totalorder %s51, %s52
      %p66 = scmp.eq.s32.totalorder %s30, 1
      %p67 = por %p65, %p66
      %p69 = scmp.ne.s32.totalorder %s52, %s68
      %p70 = scmp.eq.s32.totalorder %s30, 0
      %p71 = por %p69, %p70
      %s72 = ssub.s32 %s31, %s43
      %s73 = ssub.s32 %s32, %s39
      %s74 = sor.u32 %s72, %s73
      %p75 = scmp.eq.s32.totalorder %s74, 0
      %s77 = sadd.s32 %s76, 1
      %s78 = scalar_select %p75, %s76, %s77
      %p81 = pneg %p75
      %p82 = scmp.eq.s32.totalorder %s24, 1
      %p83 = por %p81, %p82
      %p84 = scmp.ne.s32.totalorder %s76, %s79
      %p85 = scmp.eq.s32.totalorder %s24, 0
      %p86 = por %p84, %p85
      %p87 = scmp.ne.s32.totalorder %s76, %s79
      %p88 = scmp.eq.s32.totalorder %s29, 1
      %p89 = por %p87, %p88
      %p90 = scmp.ne.s32.totalorder %s79, %s80
      %p91 = scmp.eq.s32.totalorder %s29, 0
      %p92 = por %p90, %p91
      %p93 = scmp.ne.s32.totalorder %s79, %s80
      %p94 = scmp.eq.s32.totalorder %s30, 1
      %p95 = por %p93, %p94
      %p97 = scmp.ne.s32.totalorder %s80, %s96
      %p98 = scmp.eq.s32.totalorder %s30, 0
      %p99 = por %p97, %p98
      %s100 = ssub.s32 %s32, %s39
      %p101 = scmp.eq.s32.totalorder %s100, 0
      %s103 = sadd.s32 %s102, 1
      %s104 = scalar_select %p101, %s102, %s103
      %p107 = pneg %p101
      %p108 = scmp.eq.s32.totalorder %s24, 1
      %p109 = por %p107, %p108
      %p110 = scmp.ne.s32.totalorder %s102, %s105
      %p111 = scmp.eq.s32.totalorder %s24, 0
      %p112 = por %p110, %p111
      %p113 = scmp.ne.s32.totalorder %s102, %s105
      %p114 = scmp.eq.s32.totalorder %s29, 1
      %p115 = por %p113, %p114
      %p116 = scmp.ne.s32.totalorder %s105, %s106
      %p117 = scmp.eq.s32.totalorder %s29, 0
      %p118 = por %p116, %p117
      %p119 = scmp.ne.s32.totalorder %s105, %s106
      %p120 = scmp.eq.s32.totalorder %s30, 1
      %p121 = por %p119, %p120
      %p123 = scmp.ne.s32.totalorder %s106, %s122
      %p124 = scmp.eq.s32.totalorder %s30, 0
      %p125 = por %p123, %p124
      %s126 = ssub.s32 %s32, %s39
      %p127 = scmp.eq.s32.totalorder %s126, 0
      %s129 = sadd.s32 %s128, 1
      %s130 = scalar_select %p127, %s128, %s129
      %p133 = pneg %p127
      %p134 = scmp.eq.s32.totalorder %s24, 1
      %p135 = por %p133, %p134
      %p136 = scmp.ne.s32.totalorder %s128, %s131
      %p137 = scmp.eq.s32.totalorder %s24, 0
      %p138 = por %p136, %p137
      %p139 = scmp.ne.s32.totalorder %s128, %s131
      %p140 = scmp.eq.s32.totalorder %s29, 1
      %p141 = por %p139, %p140
      %p142 = scmp.ne.s32.totalorder %s131, %s132
      %p143 = scmp.eq.s32.totalorder %s29, 0
      %p144 = por %p142, %p143
      %p145 = scmp.ne.s32.totalorder %s131, %s132
      %p146 = scmp.eq.s32.totalorder %s30, 1
      %p147 = por %p145, %p146
      %p149 = scmp.ne.s32.totalorder %s132, %s148
      %p150 = scmp.eq.s32.totalorder %s30, 0
      %p151 = por %p149, %p150
      %s152 = ssub.s32 %s31, %s43
      %s153 = ssub.s32 %s32, %s39
      %s154 = sor.u32 %s152, %s153
      %p155 = scmp.eq.s32.totalorder %s154, 0
      %s157 = sadd.s32 %s156, 1
      %s158 = scalar_select %p155, %s156, %s157
      %p161 = pneg %p155
      %p162 = scmp.eq.s32.totalorder %s24, 1
      %p163 = por %p161, %p162
      %p164 = scmp.ne.s32.totalorder %s156, %s159
      %p165 = scmp.eq.s32.totalorder %s24, 0
      %p166 = por %p164, %p165
      %p167 = scmp.ne.s32.totalorder %s156, %s159
      %p168 = scmp.eq.s32.totalorder %s29, 1
      %p169 = por %p167, %p168
      %p170 = scmp.ne.s32.totalorder %s159, %s160
      %p171 = scmp.eq.s32.totalorder %s29, 0
      %p172 = por %p170, %p171
      %p173 = scmp.ne.s32.totalorder %s159, %s160
      %p174 = scmp.eq.s32.totalorder %s30, 1
      %p175 = por %p173, %p174
      %p177 = scmp.ne.s32.totalorder %s160, %s176
      %p178 = scmp.eq.s32.totalorder %s30, 0
      %p179 = por %p177, %p178
      %s180 = ssub.s32 %s31, %s43
      %s181 = ssub.s32 %s32, %s39
      %s182 = sor.u32 %s180, %s181
      %p183 = scmp.eq.s32.totalorder %s182, 0
      %s185 = sadd.s32 %s184, 1
      %s186 = scalar_select %p183, %s184, %s185
      %p189 = pneg %p183
      %p190 = scmp.eq.s32.totalorder %s24, 1
      %p191 = por %p189, %p190
      %p192 = scmp.ne.s32.totalorder %s184, %s187
      %p193 = scmp.eq.s32.totalorder %s24, 0
      %p194 = por %p192, %p193
      %p195 = scmp.ne.s32.totalorder %s184, %s187
      %p196 = scmp.eq.s32.totalorder %s29, 1
      %p197 = por %p195, %p196
      %p198 = scmp.ne.s32.totalorder %s187, %s188
      %p199 = scmp.eq.s32.totalorder %s29, 0
      %p200 = por %p198, %p199
      %p201 = scmp.ne.s32.totalorder %s187, %s188
      %p202 = scmp.eq.s32.totalorder %s30, 1
      %p203 = por %p201, %p202
      %p205 = scmp.ne.s32.totalorder %s188, %s204
      %p206 = scmp.eq.s32.totalorder %s30, 0
      %p207 = por %p205, %p206
      %p208 = scmp.le.s32.totalorder 1, %s24
      %p209 = scmp.lt.s32.totalorder %s24, 3
      %p210 = pnand %p208, %p209
      %p211 = pneg %p210
      // Predicated region
      $region9: #{tpu_custom_call.1} parent=5 // pred_check
        _
      $region10: #{tpu_custom_call.1} parent=5 // pred_check_branch
        %213 = sbr.rel (%p210) target = $region12
      $region11: #{tpu_custom_call.1} parent=5 // pred_region
        %s214 = ssub.s32 %s24, 1
        // Predicated region
        $region13: #{tpu_custom_call.1} parent=11 // pred_check
          %p215 = pneg %p118
        $region14: #{tpu_custom_call.1} parent=11 // pred_check_branch
          %217 = sbr.rel (%p215) target = $region16
        $region15: #{tpu_custom_call.1} parent=11 // pred_region
          %s219 = ssub.s32 64, 64
          %220 = vsyncadd [#allocation6], %s219
          %s221 = smul.addr %s34, 64
          %s222 = scalar_lea.hbm %s2, %s221
          %s224 = sshll.u32 [#allocation7], 4
          %s225 = int_to_ptr.vmem [resolvable:$true] %s224
          %227 = dma.hbm_to_vmem [thread:$0]  %s222, 64, %s225, [#allocation6]
        $region16: #{tpu_custom_call.1} parent=11 // pred_fallthru
          _
        // Predicated region
        $region17: #{tpu_custom_call.1} parent=11 // pred_check
          %p228 = pneg %p144
        $region18: #{tpu_custom_call.1} parent=11 // pred_check_branch
          %230 = sbr.rel (%p228) target = $region20
        $region19: #{tpu_custom_call.1} parent=11 // pred_region
          %p231 = scmp.lt.s32.totalorder %s34, 0
          %s232 = scalar_select %p231, %s34, 0
          %s233 = smul.addr %s232, 4
          %s234 = scalar_lea.vmem %s3, %s233
        $region20: #{tpu_custom_call.1} parent=11 // pred_fallthru
          _
      $region12: #{tpu_custom_call.1} parent=5 // pred_fallthru
        _
      %p235 = scmp.lt.s32.totalorder %s24, 2
      // Predicated region
      $region21: #{tpu_custom_call.1} parent=5 // pred_check
        %p236 = pneg %p235
      $region22: #{tpu_custom_call.1} parent=5 // pred_check_branch
        %238 = sbr.rel (%p236) target = $region24
      $region23: #{tpu_custom_call.1} parent=5 // pred_region
        // Predicated region
        $region25: #{tpu_custom_call.1} parent=23 // pred_check
          %p239 = pneg %p58
        $region26: #{tpu_custom_call.1} parent=23 // pred_check_branch
          %241 = sbr.rel (%p239) target = $region28
        $region27: #{tpu_custom_call.1} parent=23 // pred_region
          %s242 = sand.u32 %s48, 1
          %s243 = scalar_lea.sflag [#allocation3], %s242
          %s244 = sand.u32 %s48, 1
          %s245 = smul.addr %s244, 16
          %s246 = scalar_lea.vmem [#allocation2], %s245
          %s247 = smul.u32 4, %s32
          %s249 = ssub.s32 256, 256
          %250 = vsyncadd %s243, %s249
          %s251 = smul.addr %s31, 4
          %s252 = sadd.s32 %s247, %s251
          %s253 = smul.addr %s252, 64
          %s254 = scalar_lea.hbm %s0, %s253
          %s255 = sshll.u32 %s246, 4
          %s256 = int_to_ptr.vmem [resolvable:$true] %s255
          %261 = dma.hbm_to_vmem [thread:$0]  %s254, 256, %s256, %s243, 64, 64, 4
        $region28: #{tpu_custom_call.1} parent=23 // pred_fallthru
          _
        // Predicated region
        $region29: #{tpu_custom_call.1} parent=23 // pred_check
          %p262 = pneg %p86
        $region30: #{tpu_custom_call.1} parent=23 // pred_check_branch
          %264 = sbr.rel (%p262) target = $region32
        $region31: #{tpu_custom_call.1} parent=23 // pred_region
          %s265 = sand.u32 %s24, 1
          %s266 = scalar_lea.sflag [#allocation6], %s265
          %s267 = sand.u32 %s76, 1
          %s268 = smul.addr %s267, 8
          %s269 = scalar_lea.vmem [#allocation5], %s268
          %s270 = smul.u32 2, %s32
          %s272 = ssub.s32 128, 128
          %273 = vsyncadd %s266, %s272
          %s274 = smul.addr %s31, 2
          %s275 = sadd.s32 %s270, %s274
          %s276 = smul.addr %s275, 64
          %s277 = scalar_lea.hbm %s1, %s276
          %s278 = sshll.u32 %s269, 4
          %s279 = int_to_ptr.vmem [resolvable:$true] %s278
          %284 = dma.hbm_to_vmem [thread:$0]  %s277, 128, %s279, %s266, 64, 64, 4
        $region32: #{tpu_custom_call.1} parent=23 // pred_fallthru
          _
      $region24: #{tpu_custom_call.1} parent=5 // pred_fallthru
        _
      %p285 = scmp.le.s32.totalorder 1, %s24
      %p286 = scmp.lt.s32.totalorder %s24, 3
      %p287 = pnand %p285, %p286
      %p288 = pneg %p287
      // Predicated region
      $region33: #{tpu_custom_call.1} parent=5 // pred_check
        _
      $region34: #{tpu_custom_call.1} parent=5 // pred_check_branch
        %290 = sbr.rel (%p287) target = $region36
      $region35: #{tpu_custom_call.1} parent=5 // pred_region
        %s291 = ssub.s32 %s24, 1
        %s292 = sand.u32 %s51, 1
        %s293 = scalar_lea.sflag [#allocation3], %s292
        %s294 = sand.u32 %s51, 1
        %s295 = smul.addr %s294, 16
        %s296 = scalar_lea.vmem [#allocation2], %s295
        // Predicated region
        $region37: #{tpu_custom_call.1} parent=35 // pred_check
          %p297 = pneg %p64
        $region38: #{tpu_custom_call.1} parent=35 // pred_check_branch
          %299 = sbr.rel (%p297) target = $region40
        $region39: #{tpu_custom_call.1} parent=35 // pred_region
          %300 = dma.done %s293, 256
        $region40: #{tpu_custom_call.1} parent=35 // pred_fallthru
          _
        %s301 = sand.u32 %s29, 1
        %s302 = scalar_lea.sflag [#allocation6], %s301
        %s303 = sand.u32 %s79, 1
        %s304 = smul.addr %s303, 8
        %s305 = scalar_lea.vmem [#allocation5], %s304
        // Predicated region
        $region41: #{tpu_custom_call.1} parent=35 // pred_check
          %p306 = pneg %p92
        $region42: #{tpu_custom_call.1} parent=35 // pred_check_branch
          %308 = sbr.rel (%p306) target = $region44
        $region43: #{tpu_custom_call.1} parent=35 // pred_region
          %309 = dma.done %s302, 128
        $region44: #{tpu_custom_call.1} parent=35 // pred_fallthru
          _
        // Predicated region
        $region45: #{tpu_custom_call.1} parent=35 // pred_check
          %p310 = pneg %p118
        $region46: #{tpu_custom_call.1} parent=35 // pred_check_branch
          %312 = sbr.rel (%p310) target = $region48
        $region47: #{tpu_custom_call.1} parent=35 // pred_region
          %313 = dma.done [#allocation6], 64
        $region48: #{tpu_custom_call.1} parent=35 // pred_fallthru
          _
        %s314 = sand.u32 %s51, 1
        %s315 = scalar_lea.sflag [#allocation3], %s314
        %s316 = sand.u32 %s51, 1
        %s317 = smul.addr %s316, 16
        %s318 = scalar_lea.vmem [#allocation2], %s317
        %p319 = pneg %p64
        %p320 = pneg %p61
        %s321 = sand.u32 %s29, 1
        %s322 = scalar_lea.sflag [#allocation6], %s321
        %s323 = sand.u32 %s79, 1
        %s324 = smul.addr %s323, 8
        %s325 = scalar_lea.vmem [#allocation5], %s324
        %p326 = pneg %p92
        %p327 = pneg %p89
        %p328 = pneg %p118
        %p329 = pneg %p115
        %p330 = scmp.lt.s32.totalorder %s34, 0
        %s331 = scalar_select %p330, %s34, 0
        %s332 = smul.addr %s331, 4
        %s333 = scalar_lea.vmem %s3, %s332
        %p334 = pneg %p144
        %p335 = pneg %p141
        %p336 = pneg %p172
        %p337 = pneg %p169
        %s338 = sand.u32 %s159, 1
        %s339 = scalar_lea.sflag [#allocation4], %s338
        %s340 = sand.u32 %s159, 1
        %s341 = smul.addr %s340, 16
        %s342 = scalar_lea.vmem [#allocation8], %s341
        %p343 = pneg %p200
        %p344 = pneg %p197
        %s345 = sand.u32 %s187, 1
        %s346 = scalar_lea.sflag [#allocation10], %s345
        %s347 = sand.u32 %s187, 1
        %s348 = smul.addr %s347, 8
        %s349 = scalar_lea.vmem [#allocation9], %s348
        %s350 = smul.u32 4, %s34
        %s351 = smul.u32 2, %s34
        %p352 = scmp.lt.s32.totalorder %s34, 0
        %s353 = scalar_select %p352, %s34, 0
        %s354 = smul.addr %s353, 4
        %s355 = scalar_lea.vmem %s3, %s354
        %s356 = smul.u32 4, %s34
        %s357 = smul.u32 2, %s34
        %v358 = vld [vmem:[#allocation7] sm:$0xf]
        %v359 = vunpack.c.l.bf16 %v358
        %v360 = vld [vmem:[%s355] sm:$0xf]
        %v361 = vunpack.c.l.bf16 %v360
        %v362 = vld [vmem:[%s296] sm:$0xf]
        %v363 = vld [vmem:[%s296 + $0x4] sm:$0xf]
        %v364 = vld [vmem:[%s296 + $0x8] sm:$0xf]
        %v365 = vld [vmem:[%s296 + $0xc] sm:$0xf]
        %v366 = vunpack.c.l.bf16 %v362
        %v367 = vunpack.c.l.bf16 %v363
        %v368 = vunpack.c.l.bf16 %v364
        %v369 = vunpack.c.l.bf16 %v365
        %v370 = vld [vmem:[%s305] sm:$0xf]
        %v371 = vld [vmem:[%s305 + $0x4] sm:$0xf]
        %v372 = vunpack.c.l.bf16 %v370
        %v373 = vunpack.c.l.bf16 %v371
        %v375 = vcombine.high %v359, %v359
        %v377 = vunpack.c.l.s4 1966171168
        %v378 = vunpack.c.0.s8 %v377
        %v379 = vlaneseq
        %v380 = vshrl.u32 %v379, 7
        %v381 = vsub.s32 %v378, %v380
        %v382 = vrot.slane %v359, %v381
        %v384 = vunpack.c.l.s4 1966171168
        %v385 = vunpack.c.0.s8 %v384
        %v386 = vlaneseq
        %v387 = vshrl.u32 %v386, 7
        %v388 = vsub.s32 %v385, %v387
        %v389 = vrot.slane %v375, %v388
        %v390 = vcombine.high %v382, %v382
        %v391 = vcombine.high %v389, %v389
        %v393 = vunpack.c.l.s4 1966171168
        %v394 = vunpack.c.0.s8 %v393
        %v395 = vlaneseq
        %v396 = vshrl.u32 %v395, 7
        %v397 = vsub.s32 %v394, %v396
        %v398 = vrot.slane %v382, %v397
        %v400 = vunpack.c.l.s4 1966171168
        %v401 = vunpack.c.0.s8 %v400
        %v402 = vlaneseq
        %v403 = vshrl.u32 %v402, 7
        %v404 = vsub.s32 %v401, %v403
        %v405 = vrot.slane %v389, %v404
        %v407 = vunpack.c.l.s4 1966171168
        %v408 = vunpack.c.0.s8 %v407
        %v409 = vlaneseq
        %v410 = vshrl.u32 %v409, 7
        %v411 = vsub.s32 %v408, %v410
        %v412 = vrot.slane %v390, %v411
        %v414 = vunpack.c.l.s4 1966171168
        %v415 = vunpack.c.0.s8 %v414
        %v416 = vlaneseq
        %v417 = vshrl.u32 %v416, 7
        %v418 = vsub.s32 %v415, %v417
        %v419 = vrot.slane %v391, %v418
        %v420 = vcombine.high %v398, %v398
        %v421 = vcombine.high %v405, %v405
        %v422 = vcombine.high %v412, %v412
        %v423 = vcombine.high %v419, %v419
        %v424 = vlaneseq
        %v425 = vshrl.u32 %v424, 7
        %v426 = vsub.s32 0, %v425
        %v427 = vrot.slane %v398, %v426
        %v428 = vlaneseq
        %v429 = vshrl.u32 %v428, 7
        %v430 = vsub.s32 0, %v429
        %v431 = vrot.slane %v412, %v430
        %v432 = vlaneseq
        %v433 = vshrl.u32 %v432, 7
        %v434 = vsub.s32 0, %v433
        %v435 = vrot.slane %v420, %v434
        %v436 = vlaneseq
        %v437 = vshrl.u32 %v436, 7
        %v438 = vsub.s32 0, %v437
        %v439 = vrot.slane %v422, %v438
        %v440 = vlaneseq
        %v441 = vshrl.u32 %v440, 7
        %v442 = vsub.s32 0, %v441
        %v443 = vrot.slane %v405, %v442
        %v444 = vlaneseq
        %v445 = vshrl.u32 %v444, 7
        %v446 = vsub.s32 0, %v445
        %v447 = vrot.slane %v419, %v446
        %v448 = vlaneseq
        %v449 = vshrl.u32 %v448, 7
        %v450 = vsub.s32 0, %v449
        %v451 = vrot.slane %v421, %v450
        %v452 = vlaneseq
        %v453 = vshrl.u32 %v452, 7
        %v454 = vsub.s32 0, %v453
        %v455 = vrot.slane %v423, %v454
        %v457 = vcombine.high %v361, %v361
        %v459 = vunpack.c.l.s4 1966171168
        %v460 = vunpack.c.0.s8 %v459
        %v461 = vlaneseq
        %v462 = vshrl.u32 %v461, 7
        %v463 = vsub.s32 %v460, %v462
        %v464 = vrot.slane %v361, %v463
        %v466 = vunpack.c.l.s4 1966171168
        %v467 = vunpack.c.0.s8 %v466
        %v468 = vlaneseq
        %v469 = vshrl.u32 %v468, 7
        %v470 = vsub.s32 %v467, %v469
        %v471 = vrot.slane %v457, %v470
        %v472 = vcombine.high %v464, %v464
        %v473 = vcombine.high %v471, %v471
        %v475 = vunpack.c.l.s4 1966171168
        %v476 = vunpack.c.0.s8 %v475
        %v477 = vlaneseq
        %v478 = vshrl.u32 %v477, 7
        %v479 = vsub.s32 %v476, %v478
        %v480 = vrot.slane %v464, %v479
        %v482 = vunpack.c.l.s4 1966171168
        %v483 = vunpack.c.0.s8 %v482
        %v484 = vlaneseq
        %v485 = vshrl.u32 %v484, 7
        %v486 = vsub.s32 %v483, %v485
        %v487 = vrot.slane %v471, %v486
        %v489 = vunpack.c.l.s4 1966171168
        %v490 = vunpack.c.0.s8 %v489
        %v491 = vlaneseq
        %v492 = vshrl.u32 %v491, 7
        %v493 = vsub.s32 %v490, %v492
        %v494 = vrot.slane %v472, %v493
        %v496 = vunpack.c.l.s4 1966171168
        %v497 = vunpack.c.0.s8 %v496
        %v498 = vlaneseq
        %v499 = vshrl.u32 %v498, 7
        %v500 = vsub.s32 %v497, %v499
        %v501 = vrot.slane %v473, %v500
        %v502 = vcombine.high %v480, %v480
        %v503 = vcombine.high %v487, %v487
        %v504 = vcombine.high %v494, %v494
        %v505 = vcombine.high %v501, %v501
        %v506 = vlaneseq
        %v507 = vshrl.u32 %v506, 7
        %v508 = vsub.s32 0, %v507
        %v509 = vrot.slane %v480, %v508
        %v510 = vlaneseq
        %v511 = vshrl.u32 %v510, 7
        %v512 = vsub.s32 0, %v511
        %v513 = vrot.slane %v494, %v512
        %v514 = vlaneseq
        %v515 = vshrl.u32 %v514, 7
        %v516 = vsub.s32 0, %v515
        %v517 = vrot.slane %v502, %v516
        %v518 = vlaneseq
        %v519 = vshrl.u32 %v518, 7
        %v520 = vsub.s32 0, %v519
        %v521 = vrot.slane %v504, %v520
        %v522 = vlaneseq
        %v523 = vshrl.u32 %v522, 7
        %v524 = vsub.s32 0, %v523
        %v525 = vrot.slane %v487, %v524
        %v526 = vlaneseq
        %v527 = vshrl.u32 %v526, 7
        %v528 = vsub.s32 0, %v527
        %v529 = vrot.slane %v501, %v528
        %v530 = vlaneseq
        %v531 = vshrl.u32 %v530, 7
        %v532 = vsub.s32 0, %v531
        %v533 = vrot.slane %v503, %v532
        %v534 = vlaneseq
        %v535 = vshrl.u32 %v534, 7
        %v536 = vsub.s32 0, %v535
        %v537 = vrot.slane %v505, %v536
        %v538 = vlaneseq
        %v539 = vand.u32 %v538, 127
        %vm540 = vcmp.lt.s32.totalorder %v539, 32
        %v541 = vsel %vm540, 1.0, -1.0
        %v542 = vmul.f32 %v366, %v541
        %v543 = vmul.f32 %v367, %v541
        %v544 = vmul.f32 %v368, %v541
        %v545 = vmul.f32 %v369, %v541
        %vm546 = vcmask 1048064
        %547 = vrot.lane.b32.xlu0 %v542, 64
        %v548 = vpop.permute.xlu0 %547
        %v549 = vsel %vm546, %v548, %v542
        %550 = vrot.lane.b32.xlu0 %v543, 64
        %v551 = vpop.permute.xlu0 %550
        %v552 = vsel %vm546, %v551, %v543
        %553 = vrot.lane.b32.xlu0 %v544, 64
        %v554 = vpop.permute.xlu0 %553
        %v555 = vsel %vm546, %v554, %v544
        %556 = vrot.lane.b32.xlu0 %v545, 64
        %v557 = vpop.permute.xlu0 %556
        %v558 = vsel %vm546, %v557, %v545
        %559 = vrot.lane.b32.xlu0 %v549, 64
        %v560 = vpop.permute.xlu0 %559
        %561 = vrot.lane.b32.xlu0 %v552, 64
        %v562 = vpop.permute.xlu0 %561
        %563 = vrot.lane.b32.xlu0 %v555, 64
        %v564 = vpop.permute.xlu0 %563
        %565 = vrot.lane.b32.xlu0 %v558, 64
        %v566 = vpop.permute.xlu0 %565
        %v567 = vsel %vm546, %v560, %v542
        %v568 = vsel %vm546, %v562, %v543
        %v569 = vsel %vm546, %v564, %v544
        %v570 = vsel %vm546, %v566, %v545
        %v571 = vcombine.low %v427, %v431
        %v572 = vcombine.low %v435, %v439
        %v573 = vcombine.low %v443, %v447
        %v574 = vcombine.low %v451, %v455
        %v579 = vmul.f32 %v366, %v571
        %v580 = vmul.f32 %v367, %v572
        %v581 = vmul.f32 %v368, %v573
        %v582 = vmul.f32 %v369, %v574
        %v583 = vcombine.low %v509, %v513
        %v584 = vcombine.low %v517, %v521
        %v585 = vcombine.low %v525, %v529
        %v586 = vcombine.low %v533, %v537
        %587 = vrot.lane.b32.xlu0 %v583, 32
        %v588 = vpop.permute.xlu0 %587
        %589 = vrot.lane.b32.xlu0 %v584, 32
        %v590 = vpop.permute.xlu0 %589
        %591 = vrot.lane.b32.xlu0 %v585, 32
        %v592 = vpop.permute.xlu0 %591
        %593 = vrot.lane.b32.xlu0 %v586, 32
        %v594 = vpop.permute.xlu0 %593
        %v599 = vmul.f32 %v567, %v588
        %v600 = vmul.f32 %v568, %v590
        %v601 = vmul.f32 %v569, %v592
        %v602 = vmul.f32 %v570, %v594
        %607 = vrot.lane.b32.xlu0 %v599, 96
        %v608 = vpop.permute.xlu0 %607
        %609 = vrot.lane.b32.xlu0 %v600, 96
        %v610 = vpop.permute.xlu0 %609
        %611 = vrot.lane.b32.xlu0 %v601, 96
        %v612 = vpop.permute.xlu0 %611
        %613 = vrot.lane.b32.xlu0 %v602, 96
        %v614 = vpop.permute.xlu0 %613
        %v619 = vadd.f32 %v579, %v608
        %v620 = vadd.f32 %v580, %v610
        %v621 = vadd.f32 %v581, %v612
        %v622 = vadd.f32 %v582, %v614
        %v623 = vmul.f32 %v372, %v541
        %v624 = vmul.f32 %v373, %v541
        %625 = vrot.lane.b32.xlu0 %v623, 64
        %v626 = vpop.permute.xlu0 %625
        %v627 = vsel %vm546, %v626, %v623
        %628 = vrot.lane.b32.xlu0 %v624, 64
        %v629 = vpop.permute.xlu0 %628
        %v630 = vsel %vm546, %v629, %v624
        %631 = vrot.lane.b32.xlu0 %v627, 64
        %v632 = vpop.permute.xlu0 %631
        %633 = vrot.lane.b32.xlu0 %v630, 64
        %v634 = vpop.permute.xlu0 %633
        %v635 = vsel %vm546, %v632, %v623
        %v636 = vsel %vm546, %v634, %v624
        %v638 = vunpack.c.l.s4 1983009808
        %v639 = vunpack.c.0.s8 %v638
        %v640 = vlaneseq
        %v641 = vshrl.u32 %v640, 7
        %v642 = vsub.s32 %v639, %v641
        %v643 = vrot.slane %v571, %v642
        %v645 = vunpack.c.l.s4 1983009808
        %v646 = vunpack.c.0.s8 %v645
        %v647 = vlaneseq
        %v648 = vshrl.u32 %v647, 7
        %v649 = vsub.s32 %v646, %v648
        %v650 = vrot.slane %v572, %v649
        %v651 = vcombine.low %v643, %v650
        %v653 = vunpack.c.l.s4 1983009808
        %v654 = vunpack.c.0.s8 %v653
        %v655 = vlaneseq
        %v656 = vshrl.u32 %v655, 7
        %v657 = vsub.s32 %v654, %v656
        %v658 = vrot.slane %v573, %v657
        %v660 = vunpack.c.l.s4 1983009808
        %v661 = vunpack.c.0.s8 %v660
        %v662 = vlaneseq
        %v663 = vshrl.u32 %v662, 7
        %v664 = vsub.s32 %v661, %v663
        %v665 = vrot.slane %v574, %v664
        %v666 = vcombine.low %v658, %v665
        %v669 = vmul.f32 %v372, %v651
        %v670 = vmul.f32 %v373, %v666
        %v672 = vunpack.c.l.s4 1983009808
        %v673 = vunpack.c.0.s8 %v672
        %v674 = vlaneseq
        %v675 = vshrl.u32 %v674, 7
        %v676 = vsub.s32 %v673, %v675
        %v677 = vrot.slane %v583, %v676
        %v679 = vunpack.c.l.s4 1983009808
        %v680 = vunpack.c.0.s8 %v679
        %v681 = vlaneseq
        %v682 = vshrl.u32 %v681, 7
        %v683 = vsub.s32 %v680, %v682
        %v684 = vrot.slane %v584, %v683
        %v685 = vcombine.low %v677, %v684
        %v687 = vunpack.c.l.s4 1983009808
        %v688 = vunpack.c.0.s8 %v687
        %v689 = vlaneseq
        %v690 = vshrl.u32 %v689, 7
        %v691 = vsub.s32 %v688, %v690
        %v692 = vrot.slane %v585, %v691
        %v694 = vunpack.c.l.s4 1983009808
        %v695 = vunpack.c.0.s8 %v694
        %v696 = vlaneseq
        %v697 = vshrl.u32 %v696, 7
        %v698 = vsub.s32 %v695, %v697
        %v699 = vrot.slane %v586, %v698
        %v700 = vcombine.low %v692, %v699
        %701 = vrot.lane.b32.xlu0 %v685, 32
        %v702 = vpop.permute.xlu0 %701
        %703 = vrot.lane.b32.xlu0 %v700, 32
        %v704 = vpop.permute.xlu0 %703
        %v707 = vmul.f32 %v635, %v702
        %v708 = vmul.f32 %v636, %v704
        %711 = vrot.lane.b32.xlu0 %v707, 96
        %v712 = vpop.permute.xlu0 %711
        %713 = vrot.lane.b32.xlu0 %v708, 96
        %v714 = vpop.permute.xlu0 %713
        %v717 = vadd.f32 %v669, %v712
        %v718 = vadd.f32 %v670, %v714
        %v719 = vand.u32 2147483647, %v619
        %v720 = vand.u32 2147483647, %v620
        %v721 = vand.u32 2147483647, %v621
        %v722 = vand.u32 2147483647, %v622
        %vm723 = vcmask 523264
        %v724 = vsel %vm723, %v719, -inf
        %725 = vmax.xlane.f32.xlu0 %v724
        %v726 = vpop.xlane.xlu0 %725
        %v727 = vsel %vm723, %v720, -inf
        %728 = vmax.xlane.f32.xlu0 %v727
        %v729 = vpop.xlane.xlu0 %728
        %v730 = vsel %vm723, %v721, -inf
        %731 = vmax.xlane.f32.xlu0 %v730
        %v732 = vpop.xlane.xlu0 %731
        %v733 = vsel %vm723, %v722, -inf
        %734 = vmax.xlane.f32.xlu0 %v733
        %v735 = vpop.xlane.xlu0 %734
        %vm736 = vcmp.gt.f32.partialorder %v726, 0.0
        %vm737 = vcmp.gt.f32.partialorder %v729, 0.0
        %vm738 = vcmp.gt.f32.partialorder %v732, 0.0
        %vm739 = vcmp.gt.f32.partialorder %v735, 0.0
        %v740 = vmul.f32 %v726, 0.007874016
        %v741 = vmul.f32 %v729, 0.007874016
        %v742 = vmul.f32 %v732, 0.007874016
        %v743 = vmul.f32 %v735, 0.007874016
        %v744 = vsel %vm736, %v740, 1.0
        %v745 = vsel %vm737, %v741, 1.0
        %v746 = vsel %vm738, %v742, 1.0
        %v747 = vsel %vm739, %v743, 1.0
        %v748 = vrcp.pop %v744
        %v749 = vrcp.pop %v745
        %v750 = vrcp.pop %v746
        %v751 = vrcp.pop %v747
        %v752 = vmul.f32 %v619, %v748
        %v753 = vmul.f32 %v620, %v749
        %v754 = vmul.f32 %v621, %v750
        %v755 = vmul.f32 %v622, %v751
        %v756 = vround.ne.pseudo %v752
        %v757 = vround.ne.pseudo %v753
        %v758 = vround.ne.pseudo %v754
        %v759 = vround.ne.pseudo %v755
        %v760 = vmax.f32 %v756, -127.0
        %v761 = vmax.f32 %v757, -127.0
        %v762 = vmax.f32 %v758, -127.0
        %v763 = vmax.f32 %v759, -127.0
        %v764 = vmin.f32 %v760, 127.0
        %v765 = vmin.f32 %v761, 127.0
        %v766 = vmin.f32 %v762, 127.0
        %v767 = vmin.f32 %v763, 127.0
        %v768 = vmul.f32 %v764, %v744
        %v769 = vmul.f32 %v765, %v745
        %v770 = vmul.f32 %v766, %v746
        %v771 = vmul.f32 %v767, %v747
        %v772 = vpack.c.bf16 %v769, %v768
        %v773 = vpack.c.bf16 %v771, %v770
        %v776 = vunpack.c.l.b16 %v772
        %v777 = vunpack.c.h.b16 %v772
        %v778 = vunpack.c.l.b16 %v773
        %v779 = vunpack.c.h.b16 %v773
        %v780 = vpack.c.b16 %v776, %v776
        %v781 = vpack.c.b16 %v777, %v777
        %v782 = vpack.c.b16 %v778, %v778
        %v783 = vpack.c.b16 %v779, %v779
        %vm788 = vcmask 519168
        %789 = vst.msk [vmem:[%s342] sm:$0xf] %vm788, %v780
        %790 = vst.msk [vmem:[%s342 + $0x4] sm:$0xf] %vm788, %v781
        %791 = vst.msk [vmem:[%s342 + $0x8] sm:$0xf] %vm788, %v782
        %792 = vst.msk [vmem:[%s342 + $0xc] sm:$0xf] %vm788, %v783
        %v793 = vpack.c.bf16 %v718, %v717
        %v795 = vunpack.c.l.b16 %v793
        %v796 = vunpack.c.h.b16 %v793
        %v797 = vpack.c.b16 %v795, %v795
        %v798 = vpack.c.b16 %v796, %v796
        %801 = vst.msk [vmem:[%s349] sm:$0xf] %vm788, %v797
        %802 = vst.msk [vmem:[%s349 + $0x4] sm:$0xf] %vm788, %v798
        %s803 = sand.u32 %s159, 1
        %s804 = scalar_lea.sflag [#allocation4], %s803
        %s805 = sand.u32 %s159, 1
        %s806 = smul.addr %s805, 16
        %s807 = scalar_lea.vmem [#allocation8], %s806
        %s808 = sand.u32 %s187, 1
        %s809 = scalar_lea.sflag [#allocation10], %s808
        %s810 = sand.u32 %s187, 1
        %s811 = smul.addr %s810, 8
        %s812 = scalar_lea.vmem [#allocation9], %s811
        // Predicated region
        $region49: #{tpu_custom_call.1} parent=35 // pred_check
          %p813 = pneg %p169
        $region50: #{tpu_custom_call.1} parent=35 // pred_check_branch
          %815 = sbr.rel (%p813) target = $region52
        $region51: #{tpu_custom_call.1} parent=35 // pred_region
          %s816 = smul.u32 4, %s34
          %s818 = ssub.s32 256, 256
          %819 = vsyncadd %s804, %s818
          %s820 = smul.addr %s33, 4
          %s821 = sadd.s32 %s816, %s820
          %s822 = smul.addr %s821, 64
          %s823 = scalar_lea.hbm %s4, %s822
          %s824 = sshll.u32 %s807, 4
          %s825 = int_to_ptr.vmem [resolvable:$true] %s824
          %830 = dma.vmem_to_hbm [thread:$0]  %s825, 256, %s823, %s804, 64, 64, 4
        $region52: #{tpu_custom_call.1} parent=35 // pred_fallthru
          _
        // Predicated region
        $region53: #{tpu_custom_call.1} parent=35 // pred_check
          %p831 = pneg %p197
        $region54: #{tpu_custom_call.1} parent=35 // pred_check_branch
          %833 = sbr.rel (%p831) target = $region56
        $region55: #{tpu_custom_call.1} parent=35 // pred_region
          %s834 = smul.u32 2, %s34
          %s836 = ssub.s32 128, 128
          %837 = vsyncadd %s809, %s836
          %s838 = smul.addr %s33, 2
          %s839 = sadd.s32 %s834, %s838
          %s840 = smul.addr %s839, 64
          %s841 = scalar_lea.hbm %s5, %s840
          %s842 = sshll.u32 %s812, 4
          %s843 = int_to_ptr.vmem [resolvable:$true] %s842
          %848 = dma.vmem_to_hbm [thread:$0]  %s843, 128, %s841, %s809, 64, 64, 4
        $region56: #{tpu_custom_call.1} parent=35 // pred_fallthru
          _
      $region36: #{tpu_custom_call.1} parent=5 // pred_fallthru
        _
      %p849 = scmp.le.s32.totalorder 2, %s24
      // Predicated region
      $region57: #{tpu_custom_call.1} parent=5 // pred_check
        %p850 = pneg %p849
      $region58: #{tpu_custom_call.1} parent=5 // pred_check_branch
        %852 = sbr.rel (%p850) target = $region60
      $region59: #{tpu_custom_call.1} parent=5 // pred_region
        %s853 = ssub.s32 %s24, 2
        // Predicated region
        $region61: #{tpu_custom_call.1} parent=59 // pred_check
          %p854 = pneg %p175
        $region62: #{tpu_custom_call.1} parent=59 // pred_check_branch
          %856 = sbr.rel (%p854) target = $region64
        $region63: #{tpu_custom_call.1} parent=59 // pred_region
          %s857 = sand.u32 %s160, 1
          %s858 = scalar_lea.sflag [#allocation4], %s857
          %s859 = sand.u32 %s160, 1
          %s860 = smul.addr %s859, 16
          %s861 = scalar_lea.vmem [#allocation8], %s860
          %862 = dma.done %s858, 256
        $region64: #{tpu_custom_call.1} parent=59 // pred_fallthru
          _
        // Predicated region
        $region65: #{tpu_custom_call.1} parent=59 // pred_check
          %p863 = pneg %p203
        $region66: #{tpu_custom_call.1} parent=59 // pred_check_branch
          %865 = sbr.rel (%p863) target = $region68
        $region67: #{tpu_custom_call.1} parent=59 // pred_region
          %s866 = sand.u32 %s188, 1
          %s867 = scalar_lea.sflag [#allocation10], %s866
          %s868 = sand.u32 %s188, 1
          %s869 = smul.addr %s868, 8
          %s870 = scalar_lea.vmem [#allocation9], %s869
          %871 = dma.done %s867, 128
        $region68: #{tpu_custom_call.1} parent=59 // pred_fallthru
          _
      $region60: #{tpu_custom_call.1} parent=5 // pred_fallthru
        _
    $region6: #{tpu_custom_call.1} parent=1 // loop_footer
      %s28 = sadd.s32 1, %s24
    $region7: #{tpu_custom_call.1} parent=1 // loop_footer_branch
      %23 = sbr.rel target = $region3
    $region8: #{tpu_custom_call.1} parent=1 // loop_exit
      _
    %872 = vsyncpa [#allocation3], 1
    %s873 = scalar_lea.sflag [#allocation3], 1
    %874 = vsyncpa %s873, 1
    %875 = vsyncpa [#allocation6], 1
    %s876 = scalar_lea.sflag [#allocation6], 1
    %877 = vsyncpa %s876, 1
    %878 = vsyncpa [#allocation4], 1
    %s879 = scalar_lea.sflag [#allocation4], 1
    %880 = vsyncpa %s879, 1
    %881 = vsyncpa [#allocation10], 1
    %s882 = scalar_lea.sflag [#allocation10], 1
    %883 = vsyncpa %s882, 1

</llo_original>
